<compile_context>
chip_gen: v6e
topology: v6e:2x2x1
jax: 0.10.0
libtpu: 0.0.40
codegen_flags: <defaults>
</compile_context>

<pallas_src>
import functools
import math

import jax
import jax.numpy as jnp
from jax.experimental import pallas as pl
from jax.experimental.pallas import tpu as pltpu


_INV_SQRT2 = 1.0 / math.sqrt(2.0)
_SQRT_2_OVER_PI = math.sqrt(2.0 / math.pi)
_LANE = 128


def _apply_activation(x, name, approximate_gelu=False):
    if name == "relu":
        return jnp.maximum(x, jnp.zeros_like(x))
    # EUP-backed activations: one cast to f32 per tile (mandatory on v5e,
    # matches torch float numerics everywhere), one cast back.
    # TODO(synk): on bf16-capable chips (v6e/v7x) bf16-native math would halve
    # vreg pressure for bf16 inputs; kept f32 for uniform numerics.
    xf = x.astype(jnp.float32)
    if name == "gelu":
        if approximate_gelu:  # opt-in tanh form (v7x VALU-bound escape hatch)
            y = 0.5 * xf * (1.0 + jnp.tanh(
                _SQRT_2_OVER_PI * (xf + 0.044715 * xf * xf * xf)))
        else:  # exact erf form, matching torch.nn.GELU default
            y = 0.5 * xf * (1.0 + jax.lax.erf(xf * _INV_SQRT2))
    elif name == "silu":
        y = xf * jax.nn.sigmoid(xf)
    elif name == "tanh":
        y = jnp.tanh(xf)
    elif name == "sigmoid":
        y = jax.nn.sigmoid(xf)
    else:
        raise ValueError(f"unsupported activation: {name}")
    return y.astype(x.dtype)


def _activation_kernel(x_ref, o_ref, *, name, approximate_gelu):
    # Pure elementwise VPU/EUP work on the current VMEM tile.
    o_ref[...] = _apply_activation(x_ref[...], name, approximate_gelu)


def _vmem_capacity_bytes():
    """Best-effort physical VMEM query; conservative (v7x) default on failure."""
    try:
        info = pltpu.get_tpu_info()
        cap = int(getattr(info, "vmem_capacity_bytes", 0) or 0)
        if cap > 0:
            return cap
    except Exception:
        pass
    return 64 * 1024 * 1024


def _pick_lane_width(n, sublane_pack):
    """Widest lane dim giving a zero-copy reshape of `n` flat elements."""
    # Best: fully packed sublanes too (unmasked full-width vst, long bursts).
    for lw in (4096, 2048, 1024, 512, 256, 128):
        if n % (lw * sublane_pack) == 0:
            return lw
    # Next: zero-copy reshape with a possibly ragged row count.
    for lw in (1024, 512, 256, 128):
        if n % lw == 0:
            return lw
    return None  # caller uses the 1-D unaligned path


def _cost_estimate(n, itemsize, name):
    trans = 0 if name == "relu" else n
    flops = 2 * n if name == "relu" else 8 * n
    return pl.CostEstimate(flops=flops, transcendentals=trans,
                           bytes_accessed=2 * n * itemsize)


def activation_wrapper_forward(x, activation="gelu", *, approximate_gelu=False,
                               target_block_bytes=None):
    """Pallas equivalent of ActivationWrapper.forward(x)."""
    orig_shape = x.shape
    dtype = x.dtype
    n = x.size
    if n == 0:
        return x

    itemsize = jnp.dtype(dtype).itemsize
    # Dtype-aware sublane packing: f32 -> 8, bf16/f16 -> 16, int8/fp8 -> 32.
    sublane_pack = max(8, 32 // itemsize)

    vmem_cap = _vmem_capacity_bytes()
    if target_block_bytes is None:
        # 8 MiB blocks on 128 MiB-VMEM chips (v5e/v6e), 4 MiB on 64 MiB (v7x);
        # in+out double-buffered -> 4x the block resident.
        target_block_bytes = (8 * 1024 * 1024 if vmem_cap >= 128 * 1024 * 1024
                              else 4 * 1024 * 1024)
    vmem_limit = int(min(64 * 1024 * 1024,
                         max(32 * 1024 * 1024, vmem_cap // 2)))

    kernel = functools.partial(_activation_kernel, name=activation,
                               approximate_gelu=approximate_gelu)
    cparams = pltpu.CompilerParams(
        dimension_semantics=("parallel",),
        vmem_limit_bytes=vmem_limit,
    )
    cost = _cost_estimate(n, itemsize, activation)

    flat = x.reshape(-1)
    lane_width = _pick_lane_width(n, sublane_pack) if n % _LANE == 0 else None

    if lane_width is None:
        # ---- Unaligned path: zero-copy 1-D view, no pad / slice round trips.
        block_len = sublane_pack * _LANE * max(
            1, target_block_bytes // (sublane_pack * _LANE * itemsize))
        if n <= block_len:
            block_len = n  # single block == full dim (no 128-divisibility rule)
        grid = (pl.cdiv(n, block_len),)  # ragged last block: writes are masked
        out = pl.pallas_call(
            kernel,
            out_shape=jax.ShapeDtypeStruct((n,), dtype),
            grid_spec=pltpu.PrefetchScalarGridSpec(
                num_scalar_prefetch=0,
                grid=grid,
                in_specs=[pl.BlockSpec((block_len,), lambda i: (i,))],
                out_specs=pl.BlockSpec((block_len,), lambda i: (i,)),
            ),
            compiler_params=cparams,
            cost_estimate=cost,
        )(flat)
        return out.reshape(orig_shape)

    # ---- Aligned path: lane-dense 2-D slab, zero-copy reshape.
    rows = n // lane_width
    slab = flat.reshape(rows, lane_width)

    block_rows = max(
        sublane_pack,
        (target_block_bytes // (lane_width * itemsize))
        // sublane_pack * sublane_pack,
    )
    if rows <= block_rows:
        # Whole tensor fits in one block.  Split into >=4 grid steps only when
        # big enough that pipelining / dual-TC streaming pays for the extra
        # ~0.35us steps; tiny tensors stay single-block (pure overhead else).
        if rows >= 4 * sublane_pack and n * itemsize >= 512 * 1024:
            block_rows = max(sublane_pack,
                             (rows // 4) // sublane_pack * sublane_pack)
        else:
            block_rows = rows  # block dims equal full dims (tiny inputs)
    grid = (pl.cdiv(rows, block_rows),)

    out = pl.pallas_call(
        kernel,
        out_shape=jax.ShapeDtypeStruct((rows, lane_width), dtype),
        grid_spec=pltpu.PrefetchScalarGridSpec(
            num_scalar_prefetch=0,
            grid=grid,
            in_specs=[pl.BlockSpec((block_rows, lane_width), lambda i: (i, 0))],
            out_specs=pl.BlockSpec((block_rows, lane_width), lambda i: (i, 0)),
        ),
        compiler_params=cparams,
        cost_estimate=cost,
    )(slab)
    return out.reshape(orig_shape)


if __name__ == "__main__":
    key = jax.random.PRNGKey(0)

    # NCHW, consistent with the typical conv-style inputs the wrapper sees.
    x = jax.random.normal(key, (2, 4, 16, 16), dtype=jnp.float32)
    y = activation_wrapper_forward(x, activation="gelu")
    jax.block_until_ready(y)
    y_ref = 0.5 * x * (1.0 + jax.lax.erf(x * _INV_SQRT2))
    assert y.shape == x.shape and y.dtype == x.dtype
    assert jnp.max(jnp.abs(y - y_ref)) < 1e-5

    # Unaligned size exercises the zero-copy 1-D tail path (no pad/slice).
    x2 = jax.random.normal(jax.random.PRNGKey(1), (3, 5, 7), dtype=jnp.float32)
    y2 = activation_wrapper_forward(x2, activation="relu")
    jax.block_until_ready(y2)
    assert y2.shape == x2.shape and y2.dtype == x2.dtype
    assert jnp.max(jnp.abs(y2 - jnp.maximum(x2, 0.0))) == 0.0

    print("KERNEL_OK")
</pallas_src>

<mosaic_0001>
module attributes {stable_mosaic.version = 11 : i64} {
  func.func @_activation_kernel(%arg0: i32, %arg1: memref<8x256xf32, #tpu.memory_space<vmem>>, %arg2: memref<8x256xf32, #tpu.memory_space<vmem>>) attributes {dimension_semantics = [#tpu.dimension_semantics<parallel>], iteration_bounds = array<i64: 1>, scalar_prefetch = 0 : i64, scratch_operands = 0 : i64, tpu.core_type = #tpu.core_type<tc>, window_params = [{transform_indices = @transform_0, window_bounds = array<i64: 8, 256>}, {transform_indices = @transform_1, window_bounds = array<i64: 8, 256>}]} {
    %c0 = arith.constant 0 : index
    %c0_0 = arith.constant 0 : index
    %0 = vector.load %arg1[%c0, %c0_0] : memref<8x256xf32, #tpu.memory_space<vmem>>, vector<8x256xf32>
    %cst = arith.constant 5.000000e-01 : f32
    %1 = vector.broadcast %cst : f32 to vector<8x256xf32>
    %2 = arith.mulf %1, %0 : vector<8x256xf32>
    %cst_1 = arith.constant 0.707106769 : f32
    %3 = vector.broadcast %cst_1 : f32 to vector<8x256xf32>
    %4 = arith.mulf %0, %3 : vector<8x256xf32>
    %5 = math.erf %4 : vector<8x256xf32>
    %cst_2 = arith.constant 1.000000e+00 : f32
    %6 = vector.broadcast %cst_2 : f32 to vector<8x256xf32>
    %7 = arith.addf %6, %5 : vector<8x256xf32>
    %8 = arith.mulf %2, %7 : vector<8x256xf32>
    %c0_3 = arith.constant 0 : index
    %c0_4 = arith.constant 0 : index
    %9 = vector.load %arg2[%c0_3, %c0_4] : memref<8x256xf32, #tpu.memory_space<vmem>>, vector<8x256xf32>
    tpu.vector_store %arg2[%c0_3, %c0_4], %8 {strides = array<i32>} : memref<8x256xf32, #tpu.memory_space<vmem>>, vector<8x256xf32>,
    return
  }
  func.func @transform_0(%arg0: i32) -> (i32, i32) {
    %c0_i32 = arith.constant 0 : i32
    %c0_i32_0 = arith.constant 0 : i32
    return %arg0, %c0_i32 : i32, i32
  }
  func.func @transform_1(%arg0: i32) -> (i32, i32) {
    %c0_i32 = arith.constant 0 : i32
    %c0_i32_0 = arith.constant 0 : i32
    return %arg0, %c0_i32 : i32, i32
  }
}

</mosaic_0001>

<llo_original>
// kernel: tpu_custom_call.1
$region0: #{tpu_custom_call.1}
  #allocation0 [shape = 'u32[]', space=smem, size = 0x4, offset = 0x4, fixed_abs, tag = 'smem constant byte address 0x4 - core index']
  #allocation1 [shape = 'u32[144,128]{1,0:T(1,128)}', space=vmem, size = 0x12000, scoped, tag = 'internal scratch']
  %s0 = inlined_call_operand.hbm [shape: f32[8,256], index: 0, kind: input, shape index: {}]
  %s1 = inlined_call_operand.hbm [shape: f32[8,256], index: 1, kind: output, shape index: {}]
  %s2 = sld [smem:[#allocation0]]
  $region18: #{tpu_custom_call.1} parent=0
    _
  %s4 = ssub.s32 1, %s2
  %s5 = scalar_select 0, %s4, %s2
  $region1: #{tpu_custom_call.1} parent=0
    #allocation2 [shape = 'u8[8192]{0}', space=vmem, size = 0x2000, scoped, tag = 'input window, operand 0, single buffered']
    #allocation3 [shape = 's32[1]{0}', space=sflag, size = 0x4, scoped, tag = 'scoped memory for tpu_custom_call.1']
    #allocation4 [shape = 's32[1]{0}', space=sflag, size = 0x4, scoped, tag = 'scoped memory for tpu_custom_call.1']
    #allocation5 [shape = 'u8[8192]{0}', space=vmem, size = 0x2000, scoped, tag = 'output window, operand 0, single buffered']
    %6 = vsyncpa [#allocation3], 0
    %7 = vsyncpa [#allocation4], 0
    // Predicated region
    $region2: #{tpu_custom_call.1} parent=1 // pred_check
      _
    $region3: #{tpu_custom_call.1} parent=1 // pred_check_branch
      %9 = sbr.rel (0) target = $region5
    $region4: #{tpu_custom_call.1} parent=1 // pred_region
      %s11 = ssub.s32 256, 256
      %12 = vsyncadd [#allocation3], %s11
      %s14 = sshll.u32 [#allocation2], 4
      %s15 = int_to_ptr.vmem [resolvable:$true] %s14
      %17 = dma.hbm_to_vmem [thread:$0]  %s0, 256, %s15, [#allocation3]
    $region5: #{tpu_custom_call.1} parent=1 // pred_fallthru
      _
    // Predicated region
    $region6: #{tpu_custom_call.1} parent=1 // pred_check
      _
    $region7: #{tpu_custom_call.1} parent=1 // pred_check_branch
      %19 = sbr.rel (0) target = $region9
    $region8: #{tpu_custom_call.1} parent=1 // pred_region
      %20 = dma.done [#allocation3], 256
    $region9: #{tpu_custom_call.1} parent=1 // pred_fallthru
      _
    %v21 = vld [vmem:[#allocation2] sm:$0xff]
    %v22 = vld [vmem:[#allocation2 + $0x8] sm:$0xff]
    %v23 = vmul.f32 %v21, 0.5
    %v24 = vmul.f32 %v22, 0.5
    %v25 = vmul.f32 %v21, 0.70710677
    %v26 = vmul.f32 %v22, 0.70710677
    %v27 = verf.f32.pop %v25
    %v28 = verf.f32.pop %v26
    %v29 = vadd.f32 %v27, 1.0
    %v30 = vadd.f32 %v28, 1.0
    %v31 = vmul.f32 %v23, %v29
    %v32 = vmul.f32 %v24, %v30
    %33 = vst [vmem:[#allocation5] sm:$0xff] %v31
    %34 = vst [vmem:[#allocation5 + $0x8] sm:$0xff] %v32
    // Predicated region
    $region10: #{tpu_custom_call.1} parent=1 // pred_check
      _
    $region11: #{tpu_custom_call.1} parent=1 // pred_check_branch
      %36 = sbr.rel (0) target = $region13
    $region12: #{tpu_custom_call.1} parent=1 // pred_region
      %s38 = ssub.s32 256, 256
      %39 = vsyncadd [#allocation4], %s38
      %s41 = sshll.u32 [#allocation5], 4
      %s42 = int_to_ptr.vmem [resolvable:$true] %s41
      %44 = dma.vmem_to_hbm [thread:$0]  %s42, 256, %s1, [#allocation4]
    $region13: #{tpu_custom_call.1} parent=1 // pred_fallthru
      _
    // Predicated region
    $region14: #{tpu_custom_call.1} parent=1 // pred_check
      _
    $region15: #{tpu_custom_call.1} parent=1 // pred_check_branch
      %46 = sbr.rel (0) target = $region17
    $region16: #{tpu_custom_call.1} parent=1 // pred_region
      %47 = dma.done [#allocation4], 256
    $region17: #{tpu_custom_call.1} parent=1 // pred_fallthru
      _
    %48 = vsyncpa [#allocation3], 1
    %49 = vsyncpa [#allocation4], 1

</llo_original>
